<compile_context>
chip_gen: v5e
topology: v5e:2x2
jax: 0.10.0
libtpu: 0.0.40
codegen_flags: <defaults>
</compile_context>

<pallas_src>
import functools

import jax
import jax.numpy as jnp
from jax.experimental import pallas as pl
from jax.experimental.pallas import tpu as pltpu

LOGIT_DIM = 10
HIDDEN_DIMS = (512, 16)
OUT_DIM = 2


def _round_up(x, m):
    return (x + m - 1) // m * m


def _mlp_kernel(x_ref, w1_ref, b1_ref, w2_ref, b2_ref, w3_ref, b3_ref, o_ref):
    """Fused transposed MLP + sigmoid + sum-normalization for one batch tile.

    x_ref : [feat_p, tb]  bf16   (batch on lanes)
    w1_ref: [H1, feat_p]  bf16, b1_ref: [H1, 1] f32
    w2_ref: [H2, H1]      bf16, b2_ref: [H2, 1] f32
    w3_ref: [2,  H2]      bf16, b3_ref: [2,  1] f32
    o_ref : [2, tb] bf16  (lane-dense output, un-transposed in the wrapper)
    """
    f32 = jnp.float32
    bf16 = jnp.bfloat16

    x = x_ref[...]                                               # [feat_p, tb] bf16

    # Layer 1: bf16 @ bf16 on the MXU, f32 accumulate; f32 bias add + ReLU on
    # the VPU, single downcast to bf16 for the next MXU feed.
    h = jnp.dot(w1_ref[...], x, preferred_element_type=f32)      # [H1, tb] f32
    h = jnp.maximum(h + b1_ref[...], 0.0).astype(bf16)

    # Layer 2.
    h = jnp.dot(w2_ref[...], h, preferred_element_type=f32)      # [H2, tb] f32
    h = jnp.maximum(h + b2_ref[...], 0.0).astype(bf16)

    # Layer 3 + sigmoid (exp goes to the EUP).
    h = jnp.dot(w3_ref[...], h, preferred_element_type=f32)      # [2, tb] f32
    raw = jax.nn.sigmoid(h + b3_ref[...])

    # Exact normalization so the two weights sum to 1.
    denom = jnp.sum(raw, axis=0, keepdims=True)                  # [1, tb]
    o_ref[...] = (raw / denom).astype(o_ref.dtype)               # dense full-lane store


def init_params(key, logit_dim=LOGIT_DIM, hidden_dims=HIDDEN_DIMS, out_dim=OUT_DIM):
    """Kaiming-normal (fan_in, relu) weights, constant 0.1 bias — matches _init_weights.

    Weights kept in PyTorch [out, in] layout (bf16); biases as [out, 1] f32 columns.
    """
    dims = [2 * logit_dim, hidden_dims[0], hidden_dims[1], out_dim]
    keys = jax.random.split(key, len(dims) - 1)
    params = []
    for k, fan_in, fan_out in zip(keys, dims[:-1], dims[1:]):
        std = (2.0 / fan_in) ** 0.5
        w = (jax.random.normal(k, (fan_out, fan_in), dtype=jnp.float32) * std).astype(jnp.bfloat16)
        b = jnp.full((fan_out, 1), 0.1, dtype=jnp.float32)
        params.append((w, b))
    return params


@functools.partial(jax.jit, static_argnames=("logit_dim", "block_batch"))
def weight_network_forward(llm_logits, slm_logits, params, logit_dim=LOGIT_DIM,
                           block_batch=2048):
    # --- glue: top-k (sorted descending, like torch.topk) and concat ---
    topk_llm = jax.lax.top_k(llm_logits, logit_dim)[0]
    topk_slm = jax.lax.top_k(slm_logits, logit_dim)[0]
    combined = jnp.concatenate([topk_llm, topk_slm], axis=-1).astype(jnp.bfloat16)

    (w1, b1), (w2, b2), (w3, b3) = params
    batch, feat = combined.shape
    h1_dim, h2_dim = w1.shape[0], w2.shape[0]

    # Zero-pad feature dim to a full 128-lane width (exact: zero rows of w1
    # contribute nothing to the matmul).
    feat_p = _round_up(feat, 128)
    w1p = jnp.pad(w1, ((0, 0), (0, feat_p - feat)))

    # ---- batch tiling ----
    batch_r = _round_up(batch, 8)
    if batch_r <= 1024:
        # Tiny batch: one tile, block dims == full array dims (legal for any size).
        tb = batch_r
    else:
        # >= 2 grid steps so both v7x TensorCores get work; tiles are multiples
        # of 128 lanes (lane-dense output blocks), capped at block_batch.
        half = _round_up(pl.cdiv(batch_r, 2), 128)
        tb = _round_up(max(128, min(block_batch, half)), 128)
    padded_batch = _round_up(batch_r, tb)

    # Transpose so the batch axis lives on lanes everywhere (lane-dense DMAs).
    x_t = jnp.pad(combined, ((0, padded_batch - batch), (0, feat_p - feat))).T  # [feat_p, PB]

    grid = (padded_batch // tb,)

    # Weights/biases: full blocks with constant index_maps -> DMA'd once,
    # resident in VMEM across all batch tiles.
    full = lambda a: pl.BlockSpec(a.shape, lambda i: (0, 0))

    flops = 2 * padded_batch * (feat_p * h1_dim + h1_dim * h2_dim + h2_dim * OUT_DIM)
    bytes_accessed = (x_t.size * 2 + padded_batch * OUT_DIM * 2
                      + (w1p.size + w2.size + w3.size) * 2
                      + (b1.size + b2.size + b3.size) * 4)

    out_t = pl.pallas_call(
        _mlp_kernel,
        out_shape=jax.ShapeDtypeStruct((OUT_DIM, padded_batch), jnp.bfloat16),
        grid=grid,
        in_specs=[
            pl.BlockSpec((feat_p, tb), lambda i: (0, i)),
            full(w1p), full(b1),
            full(w2), full(b2),
            full(w3), full(b3),
        ],
        out_specs=pl.BlockSpec((OUT_DIM, tb), lambda i: (0, i)),
        compiler_params=pltpu.CompilerParams(
            dimension_semantics=("parallel",),
            vmem_limit_bytes=32 * 1024 * 1024,
        ),
        cost_estimate=pl.CostEstimate(
            flops=flops,
            transcendentals=3 * padded_batch,
            bytes_accessed=bytes_accessed),
    )(x_t, w1p, b1, w2, b2, w3, b3)

    # Un-transpose and drop batch padding.
    return out_t.T[:batch]


if __name__ == "__main__":
    key = jax.random.PRNGKey(0)
    k_params, k_llm, k_slm = jax.random.split(key, 3)

    params = init_params(k_params)

    batch, vocab = 8, 32  # small vocab >= logit_dim
    llm_logits = jax.random.normal(k_llm, (batch, vocab), dtype=jnp.float32)
    slm_logits = jax.random.normal(k_slm, (batch, vocab), dtype=jnp.float32)

    out = weight_network_forward(llm_logits, slm_logits, params)
    out = jax.block_until_ready(out)

    assert out.shape == (batch, OUT_DIM) and out.dtype == jnp.bfloat16
    # rows should sum to ~1 (exact f32 normalize, bf16 output rounding only)
    sums = jnp.sum(out.astype(jnp.float32), axis=-1)
    assert jnp.allclose(sums, 1.0, atol=1e-2), sums
    print("KERNEL_OK")
</pallas_src>

<mosaic_0001>
module attributes {stable_mosaic.version = 11 : i64} {
  func.func @_mlp_kernel(%arg0: i32, %arg1: memref<128x8xbf16, #tpu.memory_space<vmem>>, %arg2: memref<512x128xbf16, #tpu.memory_space<vmem>>, %arg3: memref<512x1xf32, #tpu.memory_space<vmem>>, %arg4: memref<16x512xbf16, #tpu.memory_space<vmem>>, %arg5: memref<16x1xf32, #tpu.memory_space<vmem>>, %arg6: memref<2x16xbf16, #tpu.memory_space<vmem>>, %arg7: memref<2x1xf32, #tpu.memory_space<vmem>>, %arg8: memref<2x8xbf16, #tpu.memory_space<vmem>>) attributes {dimension_semantics = [#tpu.dimension_semantics<parallel>], iteration_bounds = array<i64: 1>, scalar_prefetch = 0 : i64, scratch_operands = 0 : i64, tpu.core_type = #tpu.core_type<tc>, window_params = [{transform_indices = @transform_0, window_bounds = array<i64: 128, 8>}, {pipeline_mode = #tpu.pipeline_mode<synchronous>, transform_indices = @transform_1, window_bounds = array<i64: 512, 128>}, {pipeline_mode = #tpu.pipeline_mode<synchronous>, transform_indices = @transform_2, window_bounds = array<i64: 512, 1>}, {pipeline_mode = #tpu.pipeline_mode<synchronous>, transform_indices = @transform_3, window_bounds = array<i64: 16, 512>}, {pipeline_mode = #tpu.pipeline_mode<synchronous>, transform_indices = @transform_4, window_bounds = array<i64: 16, 1>}, {pipeline_mode = #tpu.pipeline_mode<synchronous>, transform_indices = @transform_5, window_bounds = array<i64: 2, 16>}, {pipeline_mode = #tpu.pipeline_mode<synchronous>, transform_indices = @transform_6, window_bounds = array<i64: 2, 1>}, {transform_indices = @transform_7, window_bounds = array<i64: 2, 8>}]} {
    %c0 = arith.constant 0 : index
    %c0_0 = arith.constant 0 : index
    %0 = vector.load %arg1[%c0, %c0_0] : memref<128x8xbf16, #tpu.memory_space<vmem>>, vector<128x8xbf16>
    %c0_1 = arith.constant 0 : index
    %c0_2 = arith.constant 0 : index
    %1 = vector.load %arg2[%c0_1, %c0_2] : memref<512x128xbf16, #tpu.memory_space<vmem>>, vector<512x128xbf16>
    %cst = arith.constant dense<0.000000e+00> : vector<512x8xf32>
    %2 = tpu.matmul %1, %0, %cst {dimension_numbers = #tpu.dot_dimension_numbers<[1], [0], [0], [1], [0, 0, 1, 1], [], []>} : vector<512x128xbf16>, vector<128x8xbf16>, vector<512x8xf32> -> vector<512x8xf32>
    %c0_3 = arith.constant 0 : index
    %c0_4 = arith.constant 0 : index
    %3 = vector.load %arg3[%c0_3, %c0_4] : memref<512x1xf32, #tpu.memory_space<vmem>>, vector<512x1xf32>
    %4 = vector.broadcast %3 : vector<512x1xf32> to vector<512x8xf32>
    %5 = arith.addf %2, %4 : vector<512x8xf32>
    %cst_5 = arith.constant 0.000000e+00 : f32
    %6 = vector.broadcast %cst_5 : f32 to vector<512x8xf32>
    %7 = arith.maximumf %5, %6 : vector<512x8xf32>
    %8 = arith.truncf %7 : vector<512x8xf32> to vector<512x8xbf16>
    %c0_6 = arith.constant 0 : index
    %c0_7 = arith.constant 0 : index
    %9 = vector.load %arg4[%c0_6, %c0_7] : memref<16x512xbf16, #tpu.memory_space<vmem>>, vector<16x512xbf16>
    %cst_8 = arith.constant dense<0.000000e+00> : vector<16x8xf32>
    %10 = tpu.matmul %9, %8, %cst_8 {dimension_numbers = #tpu.dot_dimension_numbers<[1], [0], [0], [1], [0, 0, 1, 1], [], []>} : vector<16x512xbf16>, vector<512x8xbf16>, vector<16x8xf32> -> vector<16x8xf32>
    %c0_9 = arith.constant 0 : index
    %c0_10 = arith.constant 0 : index
    %11 = vector.load %arg5[%c0_9, %c0_10] : memref<16x1xf32, #tpu.memory_space<vmem>>, vector<16x1xf32>
    %12 = vector.broadcast %11 : vector<16x1xf32> to vector<16x8xf32>
    %13 = arith.addf %10, %12 : vector<16x8xf32>
    %cst_11 = arith.constant 0.000000e+00 : f32
    %14 = vector.broadcast %cst_11 : f32 to vector<16x8xf32>
    %15 = arith.maximumf %13, %14 : vector<16x8xf32>
    %16 = arith.truncf %15 : vector<16x8xf32> to vector<16x8xbf16>
    %c0_12 = arith.constant 0 : index
    %c0_13 = arith.constant 0 : index
    %17 = vector.load %arg6[%c0_12, %c0_13] : memref<2x16xbf16, #tpu.memory_space<vmem>>, vector<2x16xbf16>
    %cst_14 = arith.constant dense<0.000000e+00> : vector<2x8xf32>
    %18 = tpu.matmul %17, %16, %cst_14 {dimension_numbers = #tpu.dot_dimension_numbers<[1], [0], [0], [1], [0, 0, 1, 1], [], []>} : vector<2x16xbf16>, vector<16x8xbf16>, vector<2x8xf32> -> vector<2x8xf32>
    %c0_15 = arith.constant 0 : index
    %c0_16 = arith.constant 0 : index
    %19 = vector.load %arg7[%c0_15, %c0_16] : memref<2x1xf32, #tpu.memory_space<vmem>>, vector<2x1xf32>
    %20 = vector.broadcast %19 : vector<2x1xf32> to vector<2x8xf32>
    %21 = arith.addf %18, %20 : vector<2x8xf32>
    %22 = arith.negf %21 : vector<2x8xf32>
    %23 = math.exp %22 : vector<2x8xf32>
    %cst_17 = arith.constant 1.000000e+00 : f32
    %24 = vector.broadcast %cst_17 : f32 to vector<2x8xf32>
    %25 = arith.addf %24, %23 : vector<2x8xf32>
    %26 = arith.divf %24, %25 : vector<2x8xf32>
    %cst_18 = arith.constant dense<0.000000e+00> : vector<8xf32>
    %27 = vector.multi_reduction <add>, %26, %cst_18 [0] : vector<2x8xf32> to vector<8xf32>
    %28 = vector.shape_cast %27 : vector<8xf32> to vector<1x8xf32>
    %29 = vector.broadcast %28 : vector<1x8xf32> to vector<2x8xf32>
    %30 = arith.divf %26, %29 : vector<2x8xf32>
    %31 = arith.truncf %30 : vector<2x8xf32> to vector<2x8xbf16>
    %c0_19 = arith.constant 0 : index
    %c0_20 = arith.constant 0 : index
    %32 = vector.load %arg8[%c0_19, %c0_20] : memref<2x8xbf16, #tpu.memory_space<vmem>>, vector<2x8xbf16>
    tpu.vector_store %arg8[%c0_19, %c0_20], %31 {strides = array<i32>} : memref<2x8xbf16, #tpu.memory_space<vmem>>, vector<2x8xbf16>,
    return
  }
  func.func @transform_0(%arg0: i32) -> (i32, i32) {
    %c0_i32 = arith.constant 0 : i32
    %c0_i32_0 = arith.constant 0 : i32
    return %c0_i32, %arg0 : i32, i32
  }
  func.func @transform_1(%arg0: i32) -> (i32, i32) {
    %c0_i32 = arith.constant 0 : i32
    %c0_i32_0 = arith.constant 0 : i32
    %c0_i32_1 = arith.constant 0 : i32
    return %c0_i32, %c0_i32_0 : i32, i32
  }
  func.func @transform_2(%arg0: i32) -> (i32, i32) {
    %c0_i32 = arith.constant 0 : i32
    %c0_i32_0 = arith.constant 0 : i32
    %c0_i32_1 = arith.constant 0 : i32
    return %c0_i32, %c0_i32_0 : i32, i32
  }
  func.func @transform_3(%arg0: i32) -> (i32, i32) {
    %c0_i32 = arith.constant 0 : i32
    %c0_i32_0 = arith.constant 0 : i32
    %c0_i32_1 = arith.constant 0 : i32
    return %c0_i32, %c0_i32_0 : i32, i32
  }
  func.func @transform_4(%arg0: i32) -> (i32, i32) {
    %c0_i32 = arith.constant 0 : i32
    %c0_i32_0 = arith.constant 0 : i32
    %c0_i32_1 = arith.constant 0 : i32
    return %c0_i32, %c0_i32_0 : i32, i32
  }
  func.func @transform_5(%arg0: i32) -> (i32, i32) {
    %c0_i32 = arith.constant 0 : i32
    %c0_i32_0 = arith.constant 0 : i32
    %c0_i32_1 = arith.constant 0 : i32
    return %c0_i32, %c0_i32_0 : i32, i32
  }
  func.func @transform_6(%arg0: i32) -> (i32, i32) {
    %c0_i32 = arith.constant 0 : i32
    %c0_i32_0 = arith.constant 0 : i32
    %c0_i32_1 = arith.constant 0 : i32
    return %c0_i32, %c0_i32_0 : i32, i32
  }
  func.func @transform_7(%arg0: i32) -> (i32, i32) {
    %c0_i32 = arith.constant 0 : i32
    %c0_i32_0 = arith.constant 0 : i32
    return %c0_i32, %arg0 : i32, i32
  }
}

</mosaic_0001>

<llo_original>
// kernel: weight_network_forward.1
$region0: #{weight_network_forward.1}
  #allocation0 [shape = 'u32[]', space=smem, size = 0x4, offset = 0x4, fixed_abs, tag = 'smem constant byte address 0x4 - core index']
  #allocation1 [shape = 'u32[72,128]{1,0:T(1,128)}', space=vmem, size = 0x9000, scoped, tag = 'internal scratch']
  %s0 = inlined_call_operand.vmem [shape: bf16[128,8], index: 0, kind: input, shape index: {}]
  %s1 = inlined_call_operand.vmem [shape: bf16[512,128], index: 1, kind: input, shape index: {}]
  %s2 = inlined_call_operand.vmem [shape: f32[512,1], index: 2, kind: input, shape index: {}]
  %s3 = inlined_call_operand.vmem [shape: bf16[16,512], index: 3, kind: input, shape index: {}]
  %s4 = inlined_call_operand.vmem [shape: f32[16,1], index: 4, kind: input, shape index: {}]
  %s5 = inlined_call_operand.vmem [shape: bf16[2,16], index: 5, kind: input, shape index: {}]
  %s6 = inlined_call_operand.vmem [shape: f32[2,1], index: 6, kind: input, shape index: {}]
  %s7 = inlined_call_operand.hbm [shape: bf16[2,8], index: 7, kind: output, shape index: {}]
  %s8 = sld [smem:[#allocation0]]
  $region38: #{weight_network_forward.1} parent=0
    _
  %s10 = ssub.s32 1, %s8
  %s11 = scalar_select 0, %s10, %s8
  $region1: #{weight_network_forward.1} parent=0
    #allocation2 [shape = 'u8[512]{0}', space=vmem, size = 0x400, scoped, tag = 'output window, operand 0, single buffered']
    #allocation3 [shape = 's32[1]{0}', space=sflag, size = 0x4, scoped, tag = 'scoped memory for weight_network_forward.1']
    %12 = vsyncpa [#allocation3], 0
    // Predicated region
    $region2: #{weight_network_forward.1} parent=1 // pred_check
      _
    $region3: #{weight_network_forward.1} parent=1 // pred_check_branch
      %14 = sbr.rel (0) target = $region5
    $region4: #{weight_network_forward.1} parent=1 // pred_region
      _
    $region5: #{weight_network_forward.1} parent=1 // pred_fallthru
      _
    // Predicated region
    $region6: #{weight_network_forward.1} parent=1 // pred_check
      _
    $region7: #{weight_network_forward.1} parent=1 // pred_check_branch
      %16 = sbr.rel (0) target = $region9
    $region8: #{weight_network_forward.1} parent=1 // pred_region
      _
    $region9: #{weight_network_forward.1} parent=1 // pred_fallthru
      _
    // Predicated region
    $region10: #{weight_network_forward.1} parent=1 // pred_check
      _
    $region11: #{weight_network_forward.1} parent=1 // pred_check_branch
      %18 = sbr.rel (0) target = $region13
    $region12: #{weight_network_forward.1} parent=1 // pred_region
      _
    $region13: #{weight_network_forward.1} parent=1 // pred_fallthru
      _
    // Predicated region
    $region14: #{weight_network_forward.1} parent=1 // pred_check
      _
    $region15: #{weight_network_forward.1} parent=1 // pred_check_branch
      %20 = sbr.rel (0) target = $region17
    $region16: #{weight_network_forward.1} parent=1 // pred_region
      _
    $region17: #{weight_network_forward.1} parent=1 // pred_fallthru
      _
    // Predicated region
    $region18: #{weight_network_forward.1} parent=1 // pred_check
      _
    $region19: #{weight_network_forward.1} parent=1 // pred_check_branch
      %22 = sbr.rel (0) target = $region21
    $region20: #{weight_network_forward.1} parent=1 // pred_region
      _
    $region21: #{weight_network_forward.1} parent=1 // pred_fallthru
      _
    // Predicated region
    $region22: #{weight_network_forward.1} parent=1 // pred_check
      _
    $region23: #{weight_network_forward.1} parent=1 // pred_check_branch
      %24 = sbr.rel (0) target = $region25
    $region24: #{weight_network_forward.1} parent=1 // pred_region
      _
    $region25: #{weight_network_forward.1} parent=1 // pred_fallthru
      _
    // Predicated region
    $region26: #{weight_network_forward.1} parent=1 // pred_check
      _
    $region27: #{weight_network_forward.1} parent=1 // pred_check_branch
      %26 = sbr.rel (0) target = $region29
    $region28: #{weight_network_forward.1} parent=1 // pred_region
      _
    $region29: #{weight_network_forward.1} parent=1 // pred_fallthru
      _
    %v28 = vld [vmem:[%s0] sm:$0xf]
    %v29 = vld [vmem:[%s0 + $0x4] sm:$0xf]
    %v30 = vld [vmem:[%s0 + $0x8] sm:$0xf]
    %v31 = vld [vmem:[%s0 + $0xc] sm:$0xf]
    %v32 = vld [vmem:[%s0 + $0x10] sm:$0xf]
    %v33 = vld [vmem:[%s0 + $0x14] sm:$0xf]
    %v34 = vld [vmem:[%s0 + $0x18] sm:$0xf]
    %v35 = vld [vmem:[%s0 + $0x1c] sm:$0xf]
    %v36 = vld [vmem:[%s0 + $0x20] sm:$0xf]
    %v37 = vld [vmem:[%s0 + $0x24] sm:$0xf]
    %v38 = vld [vmem:[%s0 + $0x28] sm:$0xf]
    %v39 = vld [vmem:[%s0 + $0x2c] sm:$0xf]
    %v40 = vld [vmem:[%s0 + $0x30] sm:$0xf]
    %v41 = vld [vmem:[%s0 + $0x34] sm:$0xf]
    %v42 = vld [vmem:[%s0 + $0x38] sm:$0xf]
    %v43 = vld [vmem:[%s0 + $0x3c] sm:$0xf]
    %v44 = vld [vmem:[%s1] sm:$0xf]
    %v45 = vld [vmem:[%s1 + $0x4] sm:$0xf]
    %v46 = vld [vmem:[%s1 + $0x8] sm:$0xf]
    %v47 = vld [vmem:[%s1 + $0xc] sm:$0xf]
    %v48 = vld [vmem:[%s1 + $0x10] sm:$0xf]
    %v49 = vld [vmem:[%s1 + $0x14] sm:$0xf]
    %v50 = vld [vmem:[%s1 + $0x18] sm:$0xf]
    %v51 = vld [vmem:[%s1 + $0x1c] sm:$0xf]
    %v52 = vld [vmem:[%s1 + $0x20] sm:$0xf]
    %v53 = vld [vmem:[%s1 + $0x24] sm:$0xf]
    %v54 = vld [vmem:[%s1 + $0x28] sm:$0xf]
    %v55 = vld [vmem:[%s1 + $0x2c] sm:$0xf]
    %v56 = vld [vmem:[%s1 + $0x30] sm:$0xf]
    %v57 = vld [vmem:[%s1 + $0x34] sm:$0xf]
    %v58 = vld [vmem:[%s1 + $0x38] sm:$0xf]
    %v59 = vld [vmem:[%s1 + $0x3c] sm:$0xf]
    %v60 = vld [vmem:[%s1 + $0x40] sm:$0xf]
    %v61 = vld [vmem:[%s1 + $0x44] sm:$0xf]
    %v62 = vld [vmem:[%s1 + $0x48] sm:$0xf]
    %v63 = vld [vmem:[%s1 + $0x4c] sm:$0xf]
    %v64 = vld [vmem:[%s1 + $0x50] sm:$0xf]
    %v65 = vld [vmem:[%s1 + $0x54] sm:$0xf]
    %v66 = vld [vmem:[%s1 + $0x58] sm:$0xf]
    %v67 = vld [vmem:[%s1 + $0x5c] sm:$0xf]
    %v68 = vld [vmem:[%s1 + $0x60] sm:$0xf]
    %v69 = vld [vmem:[%s1 + $0x64] sm:$0xf]
    %v70 = vld [vmem:[%s1 + $0x68] sm:$0xf]
    %v71 = vld [vmem:[%s1 + $0x6c] sm:$0xf]
    %v72 = vld [vmem:[%s1 + $0x70] sm:$0xf]
    %v73 = vld [vmem:[%s1 + $0x74] sm:$0xf]
    %v74 = vld [vmem:[%s1 + $0x78] sm:$0xf]
    %v75 = vld [vmem:[%s1 + $0x7c] sm:$0xf]
    %v76 = vld [vmem:[%s1 + $0x80] sm:$0xf]
    %v77 = vld [vmem:[%s1 + $0x84] sm:$0xf]
    %v78 = vld [vmem:[%s1 + $0x88] sm:$0xf]
    %v79 = vld [vmem:[%s1 + $0x8c] sm:$0xf]
    %v80 = vld [vmem:[%s1 + $0x90] sm:$0xf]
    %v81 = vld [vmem:[%s1 + $0x94] sm:$0xf]
    %v82 = vld [vmem:[%s1 + $0x98] sm:$0xf]
    %v83 = vld [vmem:[%s1 + $0x9c] sm:$0xf]
    %v84 = vld [vmem:[%s1 + $0xa0] sm:$0xf]
    %v85 = vld [vmem:[%s1 + $0xa4] sm:$0xf]
    %v86 = vld [vmem:[%s1 + $0xa8] sm:$0xf]
    %v87 = vld [vmem:[%s1 + $0xac] sm:$0xf]
    %v88 = vld [vmem:[%s1 + $0xb0] sm:$0xf]
    %v89 = vld [vmem:[%s1 + $0xb4] sm:$0xf]
    %v90 = vld [vmem:[%s1 + $0xb8] sm:$0xf]
    %v91 = vld [vmem:[%s1 + $0xbc] sm:$0xf]
    %v92 = vld [vmem:[%s1 + $0xc0] sm:$0xf]
    %v93 = vld [vmem:[%s1 + $0xc4] sm:$0xf]
    %v94 = vld [vmem:[%s1 + $0xc8] sm:$0xf]
    %v95 = vld [vmem:[%s1 + $0xcc] sm:$0xf]
    %v96 = vld [vmem:[%s1 + $0xd0] sm:$0xf]
    %v97 = vld [vmem:[%s1 + $0xd4] sm:$0xf]
    %v98 = vld [vmem:[%s1 + $0xd8] sm:$0xf]
    %v99 = vld [vmem:[%s1 + $0xdc] sm:$0xf]
    %v100 = vld [vmem:[%s1 + $0xe0] sm:$0xf]
    %v101 = vld [vmem:[%s1 + $0xe4] sm:$0xf]
    %v102 = vld [vmem:[%s1 + $0xe8] sm:$0xf]
    %v103 = vld [vmem:[%s1 + $0xec] sm:$0xf]
    %v104 = vld [vmem:[%s1 + $0xf0] sm:$0xf]
    %v105 = vld [vmem:[%s1 + $0xf4] sm:$0xf]
    %v106 = vld [vmem:[%s1 + $0xf8] sm:$0xf]
    %v107 = vld [vmem:[%s1 + $0xfc] sm:$0xf]
    %v108 = vld [vmem:[%s2] sm:$0xff]
    %v109 = vld [vmem:[%s2 + $0x8] sm:$0xff]
    %v110 = vld [vmem:[%s2 + $0x10] sm:$0xff]
    %v111 = vld [vmem:[%s2 + $0x18] sm:$0xff]
    %v112 = vld [vmem:[%s2 + $0x20] sm:$0xff]
    %v113 = vld [vmem:[%s2 + $0x28] sm:$0xff]
    %v114 = vld [vmem:[%s2 + $0x30] sm:$0xff]
    %v115 = vld [vmem:[%s2 + $0x38] sm:$0xff]
    %v116 = vld [vmem:[%s2 + $0x40] sm:$0xff]
    %v117 = vld [vmem:[%s2 + $0x48] sm:$0xff]
    %v118 = vld [vmem:[%s2 + $0x50] sm:$0xff]
    %v119 = vld [vmem:[%s2 + $0x58] sm:$0xff]
    %v120 = vld [vmem:[%s2 + $0x60] sm:$0xff]
    %v121 = vld [vmem:[%s2 + $0x68] sm:$0xff]
    %v122 = vld [vmem:[%s2 + $0x70] sm:$0xff]
    %v123 = vld [vmem:[%s2 + $0x78] sm:$0xff]
    %v124 = vld [vmem:[%s2 + $0x80] sm:$0xff]
    %v125 = vld [vmem:[%s2 + $0x88] sm:$0xff]
    %v126 = vld [vmem:[%s2 + $0x90] sm:$0xff]
    %v127 = vld [vmem:[%s2 + $0x98] sm:$0xff]
    %v128 = vld [vmem:[%s2 + $0xa0] sm:$0xff]
    %v129 = vld [vmem:[%s2 + $0xa8] sm:$0xff]
    %v130 = vld [vmem:[%s2 + $0xb0] sm:$0xff]
    %v131 = vld [vmem:[%s2 + $0xb8] sm:$0xff]
    %v132 = vld [vmem:[%s2 + $0xc0] sm:$0xff]
    %v133 = vld [vmem:[%s2 + $0xc8] sm:$0xff]
    %v134 = vld [vmem:[%s2 + $0xd0] sm:$0xff]
    %v135 = vld [vmem:[%s2 + $0xd8] sm:$0xff]
    %v136 = vld [vmem:[%s2 + $0xe0] sm:$0xff]
    %v137 = vld [vmem:[%s2 + $0xe8] sm:$0xff]
    %v138 = vld [vmem:[%s2 + $0xf0] sm:$0xff]
    %v139 = vld [vmem:[%s2 + $0xf8] sm:$0xff]
    %v140 = vld [vmem:[%s2 + $0x100] sm:$0xff]
    %v141 = vld [vmem:[%s2 + $0x108] sm:$0xff]
    %v142 = vld [vmem:[%s2 + $0x110] sm:$0xff]
    %v143 = vld [vmem:[%s2 + $0x118] sm:$0xff]
    %v144 = vld [vmem:[%s2 + $0x120] sm:$0xff]
    %v145 = vld [vmem:[%s2 + $0x128] sm:$0xff]
    %v146 = vld [vmem:[%s2 + $0x130] sm:$0xff]
    %v147 = vld [vmem:[%s2 + $0x138] sm:$0xff]
    %v148 = vld [vmem:[%s2 + $0x140] sm:$0xff]
    %v149 = vld [vmem:[%s2 + $0x148] sm:$0xff]
    %v150 = vld [vmem:[%s2 + $0x150] sm:$0xff]
    %v151 = vld [vmem:[%s2 + $0x158] sm:$0xff]
    %v152 = vld [vmem:[%s2 + $0x160] sm:$0xff]
    %v153 = vld [vmem:[%s2 + $0x168] sm:$0xff]
    %v154 = vld [vmem:[%s2 + $0x170] sm:$0xff]
    %v155 = vld [vmem:[%s2 + $0x178] sm:$0xff]
    %v156 = vld [vmem:[%s2 + $0x180] sm:$0xff]
    %v157 = vld [vmem:[%s2 + $0x188] sm:$0xff]
    %v158 = vld [vmem:[%s2 + $0x190] sm:$0xff]
    %v159 = vld [vmem:[%s2 + $0x198] sm:$0xff]
    %v160 = vld [vmem:[%s2 + $0x1a0] sm:$0xff]
    %v161 = vld [vmem:[%s2 + $0x1a8] sm:$0xff]
    %v162 = vld [vmem:[%s2 + $0x1b0] sm:$0xff]
    %v163 = vld [vmem:[%s2 + $0x1b8] sm:$0xff]
    %v164 = vld [vmem:[%s2 + $0x1c0] sm:$0xff]
    %v165 = vld [vmem:[%s2 + $0x1c8] sm:$0xff]
    %v166 = vld [vmem:[%s2 + $0x1d0] sm:$0xff]
    %v167 = vld [vmem:[%s2 + $0x1d8] sm:$0xff]
    %v168 = vld [vmem:[%s2 + $0x1e0] sm:$0xff]
    %v169 = vld [vmem:[%s2 + $0x1e8] sm:$0xff]
    %v170 = vld [vmem:[%s2 + $0x1f0] sm:$0xff]
    %v171 = vld [vmem:[%s2 + $0x1f8] sm:$0xff]
    %173 = vset.pattern.permute.xlu0 0
    %174 = vperm.xlu0 %173, %v108
    %v175 = vpop.permute.xlu0 %174
    %178 = vset.pattern.permute.xlu0 0
    %179 = vperm.xlu0 %178, %v109
    %v180 = vpop.permute.xlu0 %179
    %183 = vset.pattern.permute.xlu0 0
    %184 = vperm.xlu0 %183, %v110
    %v185 = vpop.permute.xlu0 %184
    %188 = vset.pattern.permute.xlu0 0
    %189 = vperm.xlu0 %188, %v111
    %v190 = vpop.permute.xlu0 %189
    %193 = vset.pattern.permute.xlu0 0
    %194 = vperm.xlu0 %193, %v112
    %v195 = vpop.permute.xlu0 %194
    %198 = vset.pattern.permute.xlu0 0
    %199 = vperm.xlu0 %198, %v113
    %v200 = vpop.permute.xlu0 %199
    %203 = vset.pattern.permute.xlu0 0
    %204 = vperm.xlu0 %203, %v114
    %v205 = vpop.permute.xlu0 %204
    %208 = vset.pattern.permute.xlu0 0
    %209 = vperm.xlu0 %208, %v115
    %v210 = vpop.permute.xlu0 %209
    %213 = vset.pattern.permute.xlu0 0
    %214 = vperm.xlu0 %213, %v116
    %v215 = vpop.permute.xlu0 %214
    %218 = vset.pattern.permute.xlu0 0
    %219 = vperm.xlu0 %218, %v117
    %v220 = vpop.permute.xlu0 %219
    %223 = vset.pattern.permute.xlu0 0
    %224 = vperm.xlu0 %223, %v118
    %v225 = vpop.permute.xlu0 %224
    %228 = vset.pattern.permute.xlu0 0
    %229 = vperm.xlu0 %228, %v119
    %v230 = vpop.permute.xlu0 %229
    %233 = vset.pattern.permute.xlu0 0
    %234 = vperm.xlu0 %233, %v120
    %v235 = vpop.permute.xlu0 %234
    %238 = vset.pattern.permute.xlu0 0
    %239 = vperm.xlu0 %238, %v121
    %v240 = vpop.permute.xlu0 %239
    %243 = vset.pattern.permute.xlu0 0
    %244 = vperm.xlu0 %243, %v122
    %v245 = vpop.permute.xlu0 %244
    %248 = vset.pattern.permute.xlu0 0
    %249 = vperm.xlu0 %248, %v123
    %v250 = vpop.permute.xlu0 %249
    %253 = vset.pattern.permute.xlu0 0
    %254 = vperm.xlu0 %253, %v124
    %v255 = vpop.permute.xlu0 %254
    %258 = vset.pattern.permute.xlu0 0
    %259 = vperm.xlu0 %258, %v125
    %v260 = vpop.permute.xlu0 %259
    %263 = vset.pattern.permute.xlu0 0
    %264 = vperm.xlu0 %263, %v126
    %v265 = vpop.permute.xlu0 %264
    %268 = vset.pattern.permute.xlu0 0
    %269 = vperm.xlu0 %268, %v127
    %v270 = vpop.permute.xlu0 %269
    %273 = vset.pattern.permute.xlu0 0
    %274 = vperm.xlu0 %273, %v128
    %v275 = vpop.permute.xlu0 %274
    %278 = vset.pattern.permute.xlu0 0
    %279 = vperm.xlu0 %278, %v129
    %v280 = vpop.permute.xlu0 %279
    %283 = vset.pattern.permute.xlu0 0
    %284 = vperm.xlu0 %283, %v130
    %v285 = vpop.permute.xlu0 %284
    %288 = vset.pattern.permute.xlu0 0
    %289 = vperm.xlu0 %288, %v131
    %v290 = vpop.permute.xlu0 %289
    %293 = vset.pattern.permute.xlu0 0
    %294 = vperm.xlu0 %293, %v132
    %v295 = vpop.permute.xlu0 %294
    %298 = vset.pattern.permute.xlu0 0
    %299 = vperm.xlu0 %298, %v133
    %v300 = vpop.permute.xlu0 %299
    %303 = vset.pattern.permute.xlu0 0
    %304 = vperm.xlu0 %303, %v134
    %v305 = vpop.permute.xlu0 %304
    %308 = vset.pattern.permute.xlu0 0
    %309 = vperm.xlu0 %308, %v135
    %v310 = vpop.permute.xlu0 %309
    %313 = vset.pattern.permute.xlu0 0
    %314 = vperm.xlu0 %313, %v136
    %v315 = vpop.permute.xlu0 %314
    %318 = vset.pattern.permute.xlu0 0
    %319 = vperm.xlu0 %318, %v137
    %v320 = vpop.permute.xlu0 %319
    %323 = vset.pattern.permute.xlu0 0
    %324 = vperm.xlu0 %323, %v138
    %v325 = vpop.permute.xlu0 %324
    %328 = vset.pattern.permute.xlu0 0
    %329 = vperm.xlu0 %328, %v139
    %v330 = vpop.permute.xlu0 %329
    %333 = vset.pattern.permute.xlu0 0
    %334 = vperm.xlu0 %333, %v140
    %v335 = vpop.permute.xlu0 %334
    %338 = vset.pattern.permute.xlu0 0
    %339 = vperm.xlu0 %338, %v141
    %v340 = vpop.permute.xlu0 %339
    %343 = vset.pattern.permute.xlu0 0
    %344 = vperm.xlu0 %343, %v142
    %v345 = vpop.permute.xlu0 %344
    %348 = vset.pattern.permute.xlu0 0
    %349 = vperm.xlu0 %348, %v143
    %v350 = vpop.permute.xlu0 %349
    %353 = vset.pattern.permute.xlu0 0
    %354 = vperm.xlu0 %353, %v144
    %v355 = vpop.permute.xlu0 %354
    %358 = vset.pattern.permute.xlu0 0
    %359 = vperm.xlu0 %358, %v145
    %v360 = vpop.permute.xlu0 %359
    %363 = vset.pattern.permute.xlu0 0
    %364 = vperm.xlu0 %363, %v146
    %v365 = vpop.permute.xlu0 %364
    %368 = vset.pattern.permute.xlu0 0
    %369 = vperm.xlu0 %368, %v147
    %v370 = vpop.permute.xlu0 %369
    %373 = vset.pattern.permute.xlu0 0
    %374 = vperm.xlu0 %373, %v148
    %v375 = vpop.permute.xlu0 %374
    %378 = vset.pattern.permute.xlu0 0
    %379 = vperm.xlu0 %378, %v149
    %v380 = vpop.permute.xlu0 %379
    %383 = vset.pattern.permute.xlu0 0
    %384 = vperm.xlu0 %383, %v150
    %v385 = vpop.permute.xlu0 %384
    %388 = vset.pattern.permute.xlu0 0
    %389 = vperm.xlu0 %388, %v151
    %v390 = vpop.permute.xlu0 %389
    %393 = vset.pattern.permute.xlu0 0
    %394 = vperm.xlu0 %393, %v152
    %v395 = vpop.permute.xlu0 %394
    %398 = vset.pattern.permute.xlu0 0
    %399 = vperm.xlu0 %398, %v153
    %v400 = vpop.permute.xlu0 %399
    %403 = vset.pattern.permute.xlu0 0
    %404 = vperm.xlu0 %403, %v154
    %v405 = vpop.permute.xlu0 %404
    %408 = vset.pattern.permute.xlu0 0
    %409 = vperm.xlu0 %408, %v155
    %v410 = vpop.permute.xlu0 %409
    %413 = vset.pattern.permute.xlu0 0
    %414 = vperm.xlu0 %413, %v156
    %v415 = vpop.permute.xlu0 %414
    %418 = vset.pattern.permute.xlu0 0
    %419 = vperm.xlu0 %418, %v157
    %v420 = vpop.permute.xlu0 %419
    %423 = vset.pattern.permute.xlu0 0
    %424 = vperm.xlu0 %423, %v158
    %v425 = vpop.permute.xlu0 %424
    %428 = vset.pattern.permute.xlu0 0
    %429 = vperm.xlu0 %428, %v159
    %v430 = vpop.permute.xlu0 %429
    %433 = vset.pattern.permute.xlu0 0
    %434 = vperm.xlu0 %433, %v160
    %v435 = vpop.permute.xlu0 %434
    %438 = vset.pattern.permute.xlu0 0
    %439 = vperm.xlu0 %438, %v161
    %v440 = vpop.permute.xlu0 %439
    %443 = vset.pattern.permute.xlu0 0
    %444 = vperm.xlu0 %443, %v162
    %v445 = vpop.permute.xlu0 %444
    %448 = vset.pattern.permute.xlu0 0
    %449 = vperm.xlu0 %448, %v163
    %v450 = vpop.permute.xlu0 %449
    %453 = vset.pattern.permute.xlu0 0
    %454 = vperm.xlu0 %453, %v164
    %v455 = vpop.permute.xlu0 %454
    %458 = vset.pattern.permute.xlu0 0
    %459 = vperm.xlu0 %458, %v165
    %v460 = vpop.permute.xlu0 %459
    %463 = vset.pattern.permute.xlu0 0
    %464 = vperm.xlu0 %463, %v166
    %v465 = vpop.permute.xlu0 %464
    %468 = vset.pattern.permute.xlu0 0
    %469 = vperm.xlu0 %468, %v167
    %v470 = vpop.permute.xlu0 %469
    %473 = vset.pattern.permute.xlu0 0
    %474 = vperm.xlu0 %473, %v168
    %v475 = vpop.permute.xlu0 %474
    %478 = vset.pattern.permute.xlu0 0
    %479 = vperm.xlu0 %478, %v169
    %v480 = vpop.permute.xlu0 %479
    %483 = vset.pattern.permute.xlu0 0
    %484 = vperm.xlu0 %483, %v170
    %v485 = vpop.permute.xlu0 %484
    %488 = vset.pattern.permute.xlu0 0
    %489 = vperm.xlu0 %488, %v171
    %v490 = vpop.permute.xlu0 %489
    %v556 = vunpack.c.l.b16 %v44
    %v557 = vunpack.c.l.b16 %v45
    %v558 = vunpack.c.l.b16 %v46
    %v559 = vunpack.c.l.b16 %v47
    %v560 = vunpack.c.l.b16 %v48
    %v561 = vunpack.c.l.b16 %v49
    %v562 = vunpack.c.l.b16 %v50
    %v563 = vunpack.c.l.b16 %v51
    %v564 = vunpack.c.l.b16 %v52
    %v565 = vunpack.c.l.b16 %v53
    %v566 = vunpack.c.l.b16 %v54
    %v567 = vunpack.c.l.b16 %v55
    %v568 = vunpack.c.l.b16 %v56
    %v569 = vunpack.c.l.b16 %v57
    %v570 = vunpack.c.l.b16 %v58
    %v571 = vunpack.c.l.b16 %v59
    %v572 = vunpack.c.l.b16 %v60
    %v573 = vunpack.c.l.b16 %v61
    %v574 = vunpack.c.l.b16 %v62
    %v575 = vunpack.c.l.b16 %v63
    %v576 = vunpack.c.l.b16 %v64
    %v577 = vunpack.c.l.b16 %v65
    %v578 = vunpack.c.l.b16 %v66
    %v579 = vunpack.c.l.b16 %v67
    %v580 = vunpack.c.l.b16 %v68
    %v581 = vunpack.c.l.b16 %v69
    %v582 = vunpack.c.l.b16 %v70
    %v583 = vunpack.c.l.b16 %v71
    %v584 = vunpack.c.l.b16 %v72
    %v585 = vunpack.c.l.b16 %v73
    %v586 = vunpack.c.l.b16 %v74
    %v587 = vunpack.c.l.b16 %v75
    %v588 = vunpack.c.l.b16 %v76
    %v589 = vunpack.c.l.b16 %v77
    %v590 = vunpack.c.l.b16 %v78
    %v591 = vunpack.c.l.b16 %v79
    %v592 = vunpack.c.l.b16 %v80
    %v593 = vunpack.c.l.b16 %v81
    %v594 = vunpack.c.l.b16 %v82
    %v595 = vunpack.c.l.b16 %v83
    %v596 = vunpack.c.l.b16 %v84
    %v597 = vunpack.c.l.b16 %v85
    %v598 = vunpack.c.l.b16 %v86
    %v599 = vunpack.c.l.b16 %v87
    %v600 = vunpack.c.l.b16 %v88
    %v601 = vunpack.c.l.b16 %v89
    %v602 = vunpack.c.l.b16 %v90
    %v603 = vunpack.c.l.b16 %v91
    %v604 = vunpack.c.l.b16 %v92
    %v605 = vunpack.c.l.b16 %v93
    %v606 = vunpack.c.l.b16 %v94
    %v607 = vunpack.c.l.b16 %v95
    %v608 = vunpack.c.l.b16 %v96
    %v609 = vunpack.c.l.b16 %v97
    %v610 = vunpack.c.l.b16 %v98
    %v611 = vunpack.c.l.b16 %v99
    %v612 = vunpack.c.l.b16 %v100
    %v613 = vunpack.c.l.b16 %v101
    %v614 = vunpack.c.l.b16 %v102
    %v615 = vunpack.c.l.b16 %v103
    %v616 = vunpack.c.l.b16 %v104
    %v617 = vunpack.c.l.b16 %v105
    %v618 = vunpack.c.l.b16 %v106
    %v619 = vunpack.c.l.b16 %v107
    %v620 = vpack.c.b16 %v557, %v556
    %v621 = vpack.c.b16 %v559, %v558
    %v622 = vpack.c.b16 %v561, %v560
    %v623 = vpack.c.b16 %v563, %v562
    %v624 = vpack.c.b16 %v565, %v564
    %v625 = vpack.c.b16 %v567, %v566
    %v626 = vpack.c.b16 %v569, %v568
    %v627 = vpack.c.b16 %v571, %v570
    %v628 = vpack.c.b16 %v573, %v572
    %v629 = vpack.c.b16 %v575, %v574
    %v630 = vpack.c.b16 %v577, %v576
    %v631 = vpack.c.b16 %v579, %v578
    %v632 = vpack.c.b16 %v581, %v580
    %v633 = vpack.c.b16 %v583, %v582
    %v634 = vpack.c.b16 %v585, %v584
    %v635 = vpack.c.b16 %v587, %v586
    %v636 = vpack.c.b16 %v589, %v588
    %v637 = vpack.c.b16 %v591, %v590
    %v638 = vpack.c.b16 %v593, %v592
    %v639 = vpack.c.b16 %v595, %v594
    %v640 = vpack.c.b16 %v597, %v596
    %v641 = vpack.c.b16 %v599, %v598
    %v642 = vpack.c.b16 %v601, %v600
    %v643 = vpack.c.b16 %v603, %v602
    %v644 = vpack.c.b16 %v605, %v604
    %v645 = vpack.c.b16 %v607, %v606
    %v646 = vpack.c.b16 %v609, %v608
    %v647 = vpack.c.b16 %v611, %v610
    %v648 = vpack.c.b16 %v613, %v612
    %v649 = vpack.c.b16 %v615, %v614
    %v650 = vpack.c.b16 %v617, %v616
    %v651 = vpack.c.b16 %v619, %v618
    %v700 = vunpack.c.l.b16 %v28
    %v701 = vunpack.c.l.b16 %v29
    %v702 = vunpack.c.l.b16 %v30
    %v703 = vunpack.c.l.b16 %v31
    %v704 = vunpack.c.l.b16 %v32
    %v705 = vunpack.c.l.b16 %v33
    %v706 = vunpack.c.l.b16 %v34
    %v707 = vunpack.c.l.b16 %v35
    %v708 = vunpack.c.l.b16 %v36
    %v709 = vunpack.c.l.b16 %v37
    %v710 = vunpack.c.l.b16 %v38
    %v711 = vunpack.c.l.b16 %v39
    %v712 = vunpack.c.l.b16 %v40
    %v713 = vunpack.c.l.b16 %v41
    %v714 = vunpack.c.l.b16 %v42
    %v715 = vunpack.c.l.b16 %v43
    %v716 = vpack.c.b16 %v701, %v700
    %v717 = vpack.c.b16 %v703, %v702
    %v718 = vpack.c.b16 %v705, %v704
    %v719 = vpack.c.b16 %v707, %v706
    %v720 = vpack.c.b16 %v709, %v708
    %v721 = vpack.c.b16 %v711, %v710
    %v722 = vpack.c.b16 %v713, %v712
    %v723 = vpack.c.b16 %v715, %v714
    %732 = vmatpush.bf16.msra.mxu0 %v723
    %733 = vmatpush.bf16.msra.mxu0 %v722
    %734 = vmatpush.bf16.msra.mxu0 %v721
    %735 = vmatpush.bf16.msra.mxu0 %v720
    %736 = vmatpush.bf16.msra.mxu0 %v719
    %737 = vmatpush.bf16.msra.mxu0 %v718
    %738 = vmatpush.bf16.msra.mxu0 %v717
    %739 = vmatpush.bf16.msra.mxu0 %v716
    %740 = vmatmul.bf16.gmra.mxu0 %v620
    %v741 = vpop.f32.mrf.mxu0
    %v742 = vadd.f32 %v175, %v741
    %v743 = vpop.f32.mrf.mxu0
    %v744 = vadd.f32 %v180, %v743
    %745 = vmatmul.bf16.gmra.mxu0 %v621
    %v746 = vpop.f32.mrf.mxu0
    %v747 = vadd.f32 %v185, %v746
    %v748 = vpop.f32.mrf.mxu0
    %v749 = vadd.f32 %v190, %v748
    %750 = vmatmul.bf16.gmra.mxu0 %v622
    %v751 = vpop.f32.mrf.mxu0
    %v752 = vadd.f32 %v195, %v751
    %v753 = vpop.f32.mrf.mxu0
    %v754 = vadd.f32 %v200, %v753
    %755 = vmatmul.bf16.gmra.mxu0 %v623
    %v756 = vpop.f32.mrf.mxu0
    %v757 = vadd.f32 %v205, %v756
    %v758 = vpop.f32.mrf.mxu0
    %v759 = vadd.f32 %v210, %v758
    %760 = vmatmul.bf16.gmra.mxu0 %v624
    %v761 = vpop.f32.mrf.mxu0
    %v762 = vadd.f32 %v215, %v761
    %v763 = vpop.f32.mrf.mxu0
    %v764 = vadd.f32 %v220, %v763
    %765 = vmatmul.bf16.gmra.mxu0 %v625
    %v766 = vpop.f32.mrf.mxu0
    %v767 = vadd.f32 %v225, %v766
    %v768 = vpop.f32.mrf.mxu0
    %v769 = vadd.f32 %v230, %v768
    %770 = vmatmul.bf16.gmra.mxu0 %v626
    %v771 = vpop.f32.mrf.mxu0
    %v772 = vadd.f32 %v235, %v771
    %v773 = vpop.f32.mrf.mxu0
    %v774 = vadd.f32 %v240, %v773
    %775 = vmatmul.bf16.gmra.mxu0 %v627
    %v776 = vpop.f32.mrf.mxu0
    %v777 = vadd.f32 %v245, %v776
    %v778 = vpop.f32.mrf.mxu0
    %v779 = vadd.f32 %v250, %v778
    %780 = vmatmul.bf16.gmra.mxu0 %v628
    %v781 = vpop.f32.mrf.mxu0
    %v782 = vadd.f32 %v255, %v781
    %v783 = vpop.f32.mrf.mxu0
    %v784 = vadd.f32 %v260, %v783
    %785 = vmatmul.bf16.gmra.mxu0 %v629
    %v786 = vpop.f32.mrf.mxu0
    %v787 = vadd.f32 %v265, %v786
    %v788 = vpop.f32.mrf.mxu0
    %v789 = vadd.f32 %v270, %v788
    %790 = vmatmul.bf16.gmra.mxu0 %v630
    %v791 = vpop.f32.mrf.mxu0
    %v792 = vadd.f32 %v275, %v791
    %v793 = vpop.f32.mrf.mxu0
    %v794 = vadd.f32 %v280, %v793
    %795 = vmatmul.bf16.gmra.mxu0 %v631
    %v796 = vpop.f32.mrf.mxu0
    %v797 = vadd.f32 %v285, %v796
    %v798 = vpop.f32.mrf.mxu0
    %v799 = vadd.f32 %v290, %v798
    %800 = vmatmul.bf16.gmra.mxu0 %v632
    %v801 = vpop.f32.mrf.mxu0
    %v802 = vadd.f32 %v295, %v801
    %v803 = vpop.f32.mrf.mxu0
    %v804 = vadd.f32 %v300, %v803
    %805 = vmatmul.bf16.gmra.mxu0 %v633
    %v806 = vpop.f32.mrf.mxu0
    %v807 = vadd.f32 %v305, %v806
    %v808 = vpop.f32.mrf.mxu0
    %v809 = vadd.f32 %v310, %v808
    %810 = vmatmul.bf16.gmra.mxu0 %v634
    %v811 = vpop.f32.mrf.mxu0
    %v812 = vadd.f32 %v315, %v811
    %v813 = vpop.f32.mrf.mxu0
    %v814 = vadd.f32 %v320, %v813
    %815 = vmatmul.bf16.gmra.mxu0 %v635
    %v816 = vpop.f32.mrf.mxu0
    %v817 = vadd.f32 %v325, %v816
    %v818 = vpop.f32.mrf.mxu0
    %v819 = vadd.f32 %v330, %v818
    %820 = vmatmul.bf16.gmra.mxu0 %v636
    %v821 = vpop.f32.mrf.mxu0
    %v822 = vadd.f32 %v335, %v821
    %v823 = vpop.f32.mrf.mxu0
    %v824 = vadd.f32 %v340, %v823
    %825 = vmatmul.bf16.gmra.mxu0 %v637
    %v826 = vpop.f32.mrf.mxu0
    %v827 = vadd.f32 %v345, %v826
    %v828 = vpop.f32.mrf.mxu0
    %v829 = vadd.f32 %v350, %v828
    %830 = vmatmul.bf16.gmra.mxu0 %v638
    %v831 = vpop.f32.mrf.mxu0
    %v832 = vadd.f32 %v355, %v831
    %v833 = vpop.f32.mrf.mxu0
    %v834 = vadd.f32 %v360, %v833
    %835 = vmatmul.bf16.gmra.mxu0 %v639
    %v836 = vpop.f32.mrf.mxu0
    %v837 = vadd.f32 %v365, %v836
    %v838 = vpop.f32.mrf.mxu0
    %v839 = vadd.f32 %v370, %v838
    %840 = vmatmul.bf16.gmra.mxu0 %v640
    %v841 = vpop.f32.mrf.mxu0
    %v842 = vadd.f32 %v375, %v841
    %v843 = vpop.f32.mrf.mxu0
    %v844 = vadd.f32 %v380, %v843
    %845 = vmatmul.bf16.gmra.mxu0 %v641
    %v846 = vpop.f32.mrf.mxu0
    %v847 = vadd.f32 %v385, %v846
    %v848 = vpop.f32.mrf.mxu0
    %v849 = vadd.f32 %v390, %v848
    %850 = vmatmul.bf16.gmra.mxu0 %v642
    %v851 = vpop.f32.mrf.mxu0
    %v852 = vadd.f32 %v395, %v851
    %v853 = vpop.f32.mrf.mxu0
    %v854 = vadd.f32 %v400, %v853
    %855 = vmatmul.bf16.gmra.mxu0 %v643
    %v856 = vpop.f32.mrf.mxu0
    %v857 = vadd.f32 %v405, %v856
    %v858 = vpop.f32.mrf.mxu0
    %v859 = vadd.f32 %v410, %v858
    %860 = vmatmul.bf16.gmra.mxu0 %v644
    %v861 = vpop.f32.mrf.mxu0
    %v862 = vadd.f32 %v415, %v861
    %v863 = vpop.f32.mrf.mxu0
    %v864 = vadd.f32 %v420, %v863
    %865 = vmatmul.bf16.gmra.mxu0 %v645
    %v866 = vpop.f32.mrf.mxu0
    %v867 = vadd.f32 %v425, %v866
    %v868 = vpop.f32.mrf.mxu0
    %v869 = vadd.f32 %v430, %v868
    %870 = vmatmul.bf16.gmra.mxu0 %v646
    %v871 = vpop.f32.mrf.mxu0
    %v872 = vadd.f32 %v435, %v871
    %v873 = vpop.f32.mrf.mxu0
    %v874 = vadd.f32 %v440, %v873
    %875 = vmatmul.bf16.gmra.mxu0 %v647
    %v876 = vpop.f32.mrf.mxu0
    %v877 = vadd.f32 %v445, %v876
    %v878 = vpop.f32.mrf.mxu0
    %v879 = vadd.f32 %v450, %v878
    %880 = vmatmul.bf16.gmra.mxu0 %v648
    %v881 = vpop.f32.mrf.mxu0
    %v882 = vadd.f32 %v455, %v881
    %v883 = vpop.f32.mrf.mxu0
    %v884 = vadd.f32 %v460, %v883
    %885 = vmatmul.bf16.gmra.mxu0 %v649
    %v886 = vpop.f32.mrf.mxu0
    %v887 = vadd.f32 %v465, %v886
    %v888 = vpop.f32.mrf.mxu0
    %v889 = vadd.f32 %v470, %v888
    %890 = vmatmul.bf16.gmra.mxu0 %v650
    %v891 = vpop.f32.mrf.mxu0
    %v892 = vadd.f32 %v475, %v891
    %v893 = vpop.f32.mrf.mxu0
    %v894 = vadd.f32 %v480, %v893
    %895 = vmatmul.bf16.gmra.mxu0 %v651
    %v896 = vpop.f32.mrf.mxu0
    %v897 = vadd.f32 %v485, %v896
    %v898 = vpop.f32.mrf.mxu0
    %v899 = vadd.f32 %v490, %v898
    %900 = vdwg.mxu0
    %v901 = vmax.f32 %v742, 0.0
    %v902 = vmax.f32 %v744, 0.0
    %v903 = vmax.f32 %v747, 0.0
    %v904 = vmax.f32 %v749, 0.0
    %v905 = vmax.f32 %v752, 0.0
    %v906 = vmax.f32 %v754, 0.0
    %v907 = vmax.f32 %v757, 0.0
    %v908 = vmax.f32 %v759, 0.0
    %v909 = vmax.f32 %v762, 0.0
    %v910 = vmax.f32 %v764, 0.0
    %v911 = vmax.f32 %v767, 0.0
    %v912 = vmax.f32 %v769, 0.0
    %v913 = vmax.f32 %v772, 0.0
    %v914 = vmax.f32 %v774, 0.0
    %v915 = vmax.f32 %v777, 0.0
    %v916 = vmax.f32 %v779, 0.0
    %v917 = vmax.f32 %v782, 0.0
    %v918 = vmax.f32 %v784, 0.0
    %v919 = vmax.f32 %v787, 0.0
    %v920 = vmax.f32 %v789, 0.0
    %v921 = vmax.f32 %v792, 0.0
    %v922 = vmax.f32 %v794, 0.0
    %v923 = vmax.f32 %v797, 0.0
    %v924 = vmax.f32 %v799, 0.0
    %v925 = vmax.f32 %v802, 0.0
    %v926 = vmax.f32 %v804, 0.0
    %v927 = vmax.f32 %v807, 0.0
    %v928 = vmax.f32 %v809, 0.0
    %v929 = vmax.f32 %v812, 0.0
    %v930 = vmax.f32 %v814, 0.0
    %v931 = vmax.f32 %v817, 0.0
    %v932 = vmax.f32 %v819, 0.0
    %v933 = vmax.f32 %v822, 0.0
    %v934 = vmax.f32 %v824, 0.0
    %v935 = vmax.f32 %v827, 0.0
    %v936 = vmax.f32 %v829, 0.0
    %v937 = vmax.f32 %v832, 0.0
    %v938 = vmax.f32 %v834, 0.0
    %v939 = vmax.f32 %v837, 0.0
    %v940 = vmax.f32 %v839, 0.0
    %v941 = vmax.f32 %v842, 0.0
    %v942 = vmax.f32 %v844, 0.0
    %v943 = vmax.f32 %v847, 0.0
    %v944 = vmax.f32 %v849, 0.0
    %v945 = vmax.f32 %v852, 0.0
    %v946 = vmax.f32 %v854, 0.0
    %v947 = vmax.f32 %v857, 0.0
    %v948 = vmax.f32 %v859, 0.0
    %v949 = vmax.f32 %v862, 0.0
    %v950 = vmax.f32 %v864, 0.0
    %v951 = vmax.f32 %v867, 0.0
    %v952 = vmax.f32 %v869, 0.0
    %v953 = vmax.f32 %v872, 0.0
    %v954 = vmax.f32 %v874, 0.0
    %v955 = vmax.f32 %v877, 0.0
    %v956 = vmax.f32 %v879, 0.0
    %v957 = vmax.f32 %v882, 0.0
    %v958 = vmax.f32 %v884, 0.0
    %v959 = vmax.f32 %v887, 0.0
    %v960 = vmax.f32 %v889, 0.0
    %v961 = vmax.f32 %v892, 0.0
    %v962 = vmax.f32 %v894, 0.0
    %v963 = vmax.f32 %v897, 0.0
    %v964 = vmax.f32 %v899, 0.0
    %v965 = vpack.c.bf16 %v902, %v901
    %v966 = vpack.c.bf16 %v904, %v903
    %v967 = vpack.c.bf16 %v906, %v905
    %v968 = vpack.c.bf16 %v908, %v907
    %v969 = vpack.c.bf16 %v910, %v909
    %v970 = vpack.c.bf16 %v912, %v911
    %v971 = vpack.c.bf16 %v914, %v913
    %v972 = vpack.c.bf16 %v916, %v915
    %v973 = vpack.c.bf16 %v918, %v917
    %v974 = vpack.c.bf16 %v920, %v919
    %v975 = vpack.c.bf16 %v922, %v921
    %v976 = vpack.c.bf16 %v924, %v923
    %v977 = vpack.c.bf16 %v926, %v925
    %v978 = vpack.c.bf16 %v928, %v927
    %v979 = vpack.c.bf16 %v930, %v929
    %v980 = vpack.c.bf16 %v932, %v931
    %v981 = vpack.c.bf16 %v934, %v933
    %v982 = vpack.c.bf16 %v936, %v935
    %v983 = vpack.c.bf16 %v938, %v937
    %v984 = vpack.c.bf16 %v940, %v939
    %v985 = vpack.c.bf16 %v942, %v941
    %v986 = vpack.c.bf16 %v944, %v943
    %v987 = vpack.c.bf16 %v946, %v945
    %v988 = vpack.c.bf16 %v948, %v947
    %v989 = vpack.c.bf16 %v950, %v949
    %v990 = vpack.c.bf16 %v952, %v951
    %v991 = vpack.c.bf16 %v954, %v953
    %v992 = vpack.c.bf16 %v956, %v955
    %v993 = vpack.c.bf16 %v958, %v957
    %v994 = vpack.c.bf16 %v960, %v959
    %v995 = vpack.c.bf16 %v962, %v961
    %v996 = vpack.c.bf16 %v964, %v963
    %v997 = vld [vmem:[%s3] sm:$0xff]
    %v998 = vld [vmem:[%s3 + $0x8] sm:$0xff]
    %v999 = vld [vmem:[%s3 + $0x10] sm:$0xff]
    %v1000 = vld [vmem:[%s3 + $0x18] sm:$0xff]
    %v1001 = vld [vmem:[%s4] sm:$0xff]
    %v1002 = vld [vmem:[%s4 + $0x8] sm:$0xff]
    %1004 = vset.pattern.permute.xlu0 0
    %1005 = vperm.xlu0 %1004, %v1001
    %v1006 = vpop.permute.xlu0 %1005
    %1009 = vset.pattern.permute.xlu0 0
    %1010 = vperm.xlu0 %1009, %v1002
    %v1011 = vpop.permute.xlu0 %1010
    %v1017 = vunpack.c.l.b16 %v997
    %v1018 = vunpack.c.h.b16 %v997
    %v1019 = vunpack.c.l.b16 %v998
    %v1020 = vunpack.c.h.b16 %v998
    %v1021 = vunpack.c.l.b16 %v999
    %v1022 = vunpack.c.h.b16 %v999
    %v1023 = vunpack.c.l.b16 %v1000
    %v1024 = vunpack.c.h.b16 %v1000
    %v1025 = vpack.c.b16 %v1021, %v1017
    %v1026 = vpack.c.b16 %v1022, %v1018
    %v1027 = vpack.c.b16 %v1023, %v1019
    %v1028 = vpack.c.b16 %v1024, %v1020
    %1033 = vmatpush.bf16.msra.mxu0 %v972
    %1034 = vmatpush.bf16.msra.mxu0 %v971
    %1035 = vmatpush.bf16.msra.mxu0 %v970
    %1036 = vmatpush.bf16.msra.mxu0 %v969
    %1037 = vmatpush.bf16.msra.mxu0 %v968
    %1038 = vmatpush.bf16.msra.mxu0 %v967
    %1039 = vmatpush.bf16.msra.mxu0 %v966
    %1040 = vmatpush.bf16.msra.mxu0 %v965
    %1041 = vmatmul.bf16.gmra.mxu0 %v1025
    %v1042 = vpop.f32.mrf.mxu0
    %v1043 = vadd.f32 %v1006, %v1042
    %v1044 = vpop.f32.mrf.mxu0
    %v1045 = vadd.f32 %v1011, %v1044
    %1046 = vdwg.mxu0
    %1047 = vmatpush.bf16.msra.mxu0 %v980
    %1048 = vmatpush.bf16.msra.mxu0 %v979
    %1049 = vmatpush.bf16.msra.mxu0 %v978
    %1050 = vmatpush.bf16.msra.mxu0 %v977
    %1051 = vmatpush.bf16.msra.mxu0 %v976
    %1052 = vmatpush.bf16.msra.mxu0 %v975
    %1053 = vmatpush.bf16.msra.mxu0 %v974
    %1054 = vmatpush.bf16.msra.mxu0 %v973
    %1055 = vmatmul.bf16.gmra.mxu0 %v1026
    %v1056 = vpop.f32.mrf.mxu0
    %v1057 = vadd.f32 %v1043, %v1056
    %v1058 = vpop.f32.mrf.mxu0
    %v1059 = vadd.f32 %v1045, %v1058
    %1060 = vdwg.mxu0
    %1061 = vmatpush.bf16.msra.mxu0 %v988
    %1062 = vmatpush.bf16.msra.mxu0 %v987
    %1063 = vmatpush.bf16.msra.mxu0 %v986
    %1064 = vmatpush.bf16.msra.mxu0 %v985
    %1065 = vmatpush.bf16.msra.mxu0 %v984
    %1066 = vmatpush.bf16.msra.mxu0 %v983
    %1067 = vmatpush.bf16.msra.mxu0 %v982
    %1068 = vmatpush.bf16.msra.mxu0 %v981
    %1069 = vmatmul.bf16.gmra.mxu0 %v1027
    %v1070 = vpop.f32.mrf.mxu0
    %v1071 = vadd.f32 %v1057, %v1070
    %v1072 = vpop.f32.mrf.mxu0
    %v1073 = vadd.f32 %v1059, %v1072
    %1074 = vdwg.mxu0
    %1075 = vmatpush.bf16.msra.mxu0 %v996
    %1076 = vmatpush.bf16.msra.mxu0 %v995
    %1077 = vmatpush.bf16.msra.mxu0 %v994
    %1078 = vmatpush.bf16.msra.mxu0 %v993
    %1079 = vmatpush.bf16.msra.mxu0 %v992
    %1080 = vmatpush.bf16.msra.mxu0 %v991
    %1081 = vmatpush.bf16.msra.mxu0 %v990
    %1082 = vmatpush.bf16.msra.mxu0 %v989
    %1083 = vmatmul.bf16.gmra.mxu0 %v1028
    %v1084 = vpop.f32.mrf.mxu0
    %v1085 = vadd.f32 %v1071, %v1084
    %v1086 = vpop.f32.mrf.mxu0
    %v1087 = vadd.f32 %v1073, %v1086
    %1088 = vdwg.mxu0
    %v1089 = vmax.f32 %v1085, 0.0
    %v1090 = vmax.f32 %v1087, 0.0
    %v1091 = vpack.c.bf16 %v1090, %v1089
    %v1092 = vld [vmem:[%s5] sm:$0x1]
    %v1093 = vld [vmem:[%s6] sm:$0x3]
    %1095 = vset.pattern.permute.xlu0 0
    %1096 = vperm.xlu0 %1095, %v1093
    %v1097 = vpop.permute.xlu0 %1096
    %vm1099 = vcmask 130048
    %v1101 = vsel %vm1099, %v1092, 0
    %1103 = vmatpush.bf16.msra.mxu0 0
    %1104 = vmatpush.bf16.msra.mxu0 0
    %1105 = vmatpush.bf16.msra.mxu0 0
    %1106 = vmatpush.bf16.msra.mxu0 0
    %1107 = vmatpush.bf16.msra.mxu0 0
    %1108 = vmatpush.bf16.msra.mxu0 0
    %1109 = vmatpush.bf16.msra.mxu0 0
    %1110 = vmatpush.bf16.msra.mxu0 %v1091
    %1111 = vmatmul.bf16.gmra.mxu0 %v1101
    %v1112 = vpop.f32.mrf.mxu0
    %v1113 = vadd.f32 %v1097, %v1112
    %v1114 = vpop.f32.mrf.mxu0
    %1115 = vdwg.mxu0
    %v1116 = vxor.u32 %v1113, 2147483648
    %v1117 = vmul.f32 %v1116, 1.442695
    %v1118 = vpow.pop %v1117
    %v1119 = vadd.f32 %v1118, 1.0
    %v1120 = vrcp.pop %v1119
    %v1121 = vmul.f32 %v1119, %v1120
    %v1122 = vsub.f32 1.0, %v1121
    %v1123 = vmul.f32 %v1120, %v1122
    %v1124 = vadd.f32 %v1120, %v1123
    %vm1125 = vweird.f32 %v1119
    %vm1126 = vweird.f32 %v1120
    %vm1127 = vmor %vm1125, %vm1126
    %v1128 = vsel %vm1127, %v1120, %v1124
    %v1129 = vand.u32 2147483647, %v1119
    %vm1130 = vcmp.eq.f32.partialorder %v1129, 8.507059e+37
    %v1131 = vand.u32 %v1119, 2147483648
    %v1132 = vor.u32 1.1754944e-38, %v1131
    %v1133 = vsel %vm1130, %v1132, %v1128
    %v1134 = vmul.f32 1.0, %v1133
    %vm1135 = vcmask 58368
    %v1136 = vsel %vm1135, %v1134, 0.0
    %v1137 = vrot.slane %v1136, 4
    %v1138 = vadd.f32 %v1136, %v1137
    %v1139 = vrot.slane %v1138, 2
    %v1140 = vadd.f32 %v1138, %v1139
    %v1141 = vrot.slane %v1140, 1
    %v1142 = vadd.f32 %v1140, %v1141
    %v1143 = vrcp.pop %v1142
    %v1144 = vmul.f32 %v1142, %v1143
    %v1145 = vsub.f32 1.0, %v1144
    %v1146 = vmul.f32 %v1143, %v1145
    %v1147 = vadd.f32 %v1143, %v1146
    %vm1148 = vweird.f32 %v1142
    %vm1149 = vweird.f32 %v1143
    %vm1150 = vmor %vm1148, %vm1149
    %v1151 = vsel %vm1150, %v1143, %v1147
    %v1152 = vand.u32 2147483647, %v1142
    %vm1153 = vcmp.eq.f32.partialorder %v1152, 8.507059e+37
    %v1154 = vand.u32 %v1142, 2147483648
    %v1155 = vor.u32 1.1754944e-38, %v1154
    %v1156 = vsel %vm1153, %v1155, %v1151
    %v1157 = vmul.f32 %v1134, %v1156
    %v1158 = vpack.c.bf16 %v1157, %v1157
    %vm1159 = vcmask 57344
    %1160 = vst.msk [vmem:[#allocation2] sm:$0x1] %vm1159, %v1158
    // Predicated region
    $region30: #{weight_network_forward.1} parent=1 // pred_check
      _
    $region31: #{weight_network_forward.1} parent=1 // pred_check_branch
      %1162 = sbr.rel (0) target = $region33
    $region32: #{weight_network_forward.1} parent=1 // pred_region
      %1164 = vsyncadd [#allocation3], 0
      %s1166 = sshll.u32 [#allocation2], 4
      %s1167 = int_to_ptr.vmem [resolvable:$true] %s1166
      %s1168 = sshll.u32 %s7, 4
      %s1169 = int_to_ptr.hbm [resolvable:$true] %s1168
      %1171 = dma.vmem_to_hbm [thread:$0]  %s1167, 16, %s1169, [#allocation3]
    $region33: #{weight_network_forward.1} parent=1 // pred_fallthru
      _
    // Predicated region
    $region34: #{weight_network_forward.1} parent=1 // pred_check
      _
    $region35: #{weight_network_forward.1} parent=1 // pred_check_branch
      %1173 = sbr.rel (0) target = $region37
    $region36: #{weight_network_forward.1} parent=1 // pred_region
      %1175 = dma.done [#allocation3], 16
    $region37: #{weight_network_forward.1} parent=1 // pred_fallthru
      _
    %1176 = vsyncpa [#allocation3], 1

</llo_original>
